<compile_context>
chip_gen: v7x
topology: tpu7x:2x2x1
jax: 0.10.0
libtpu: 0.0.40
codegen_flags: <defaults>
</compile_context>

<pallas_src>
import jax
import jax.numpy as jnp
from jax.experimental import pallas as pl
from jax.experimental.pallas import tpu as pltpu

STATE_DIM = 10
HIDDEN_DIM = 128
LN_EPS = 1e-5  # PyTorch nn.LayerNorm default


def _round_up(n, m):
    return (n + m - 1) // m * m


def _layernorm(h, gamma, beta):
    mean = jnp.mean(h, axis=-1, keepdims=True)
    centered = h - mean
    var = jnp.mean(centered * centered, axis=-1, keepdims=True)
    inv = jax.lax.rsqrt(var + LN_EPS)
    return centered * inv * gamma + beta


def valuenet_kernel(x_ref, w1_ref, w2_ref, vecs_ref, w3_ref, b3_ref, o_ref):
    x = x_ref[...]                       # (bt, S)

    # packed bias / LayerNorm vectors: rows [b1, g1, be1, b2, g2, be2, 0, 0]
    b1 = vecs_ref[0:1, :]
    g1 = vecs_ref[1:2, :]
    be1 = vecs_ref[2:3, :]
    b2 = vecs_ref[3:4, :]
    g2 = vecs_ref[4:5, :]
    be2 = vecs_ref[5:6, :]

    # layer1: Linear -> ReLU -> LayerNorm
    h = jnp.dot(x, w1_ref[...], preferred_element_type=jnp.float32) + b1
    h = jnp.maximum(h, 0.0)
    h = _layernorm(h, g1, be1)

    # layer2: Linear -> ReLU -> LayerNorm
    h = jnp.dot(h, w2_ref[...], preferred_element_type=jnp.float32) + b2
    h = jnp.maximum(h, 0.0)
    h = _layernorm(h, g2, be2)

    # fc: Linear(H, 1) as VPU multiply + lane reduction (avoid N=1 MXU pass)
    v = jnp.sum(h * w3_ref[...], axis=-1) + b3_ref[0]        # (bt,)
    # lane-dense store: batch on the lane axis of a (1, bt) output slab
    o_ref[...] = v[None, :].astype(o_ref.dtype)


def value_net_forward(x, params, *, batch_tile=512):
    B, S = x.shape
    H = params["w1"].shape[1]

    # --- tile selection --------------------------------------------------
    # lane-dense output needs bt % 128 == 0; clamp to the (rounded) batch and
    # keep at least 2 grid steps when the batch allows it (v7x has 2 TCs).
    bt = max(128, min(_round_up(batch_tile, 128), _round_up(B, 128)))
    if bt >= B and B > 256:
        bt = _round_up(-(-B // 2), 128)
    B_pad = _round_up(B, bt)
    num_tiles = B_pad // bt

    if B_pad != B:
        x = jnp.pad(x, ((0, B_pad - B), (0, 0)))

    # --- pack small parameters -------------------------------------------
    vecs = jnp.concatenate(
        [params["b1"], params["ln1_g"], params["ln1_b"],
         params["b2"], params["ln2_g"], params["ln2_b"],
         jnp.zeros((2, H), jnp.float32)],
        axis=0,
    )                                            # (8, H): exactly one f32 tile
    w3_row = params["w3"].T                      # (1, H)
    b3_scalar = params["b3"].reshape(-1)         # (1,) scalar in SMEM

    in_specs = [
        pl.BlockSpec((bt, S), lambda i: (i, 0)),               # x tile
        pl.BlockSpec((S, H), lambda i: (0, 0)),                # w1
        pl.BlockSpec((H, H), lambda i: (0, 0)),                # w2
        pl.BlockSpec((8, H), lambda i: (0, 0)),                # packed vectors
        pl.BlockSpec((1, H), lambda i: (0, 0)),                # w3 row
        pl.BlockSpec(memory_space=pltpu.MemorySpace.SMEM),     # b3 scalar
    ]
    out_spec = pl.BlockSpec((1, bt), lambda i: (i, 0))          # lane-dense

    out_tiles = pl.pallas_call(
        valuenet_kernel,
        out_shape=jax.ShapeDtypeStruct((num_tiles, bt), jnp.float32),
        grid_spec=pltpu.PrefetchScalarGridSpec(
            num_scalar_prefetch=0,
            grid=(num_tiles,),
            in_specs=in_specs,
            out_specs=out_spec,
        ),
        compiler_params=pltpu.CompilerParams(
            dimension_semantics=("parallel",),
        ),
    )(x, params["w1"], params["w2"], vecs, w3_row, b3_scalar)

    # (num_tiles, bt) row-major == batch order; trim padding, restore (B, 1)
    return out_tiles.reshape(B_pad, 1)[:B]


def init_params(key, state_dim, hidden_dim):
    """Deterministic synthetic params (PyTorch-style uniform fan-in init)."""
    ks = jax.random.split(key, 6)

    def linear(kw, kb, fan_in, fan_out):
        bound = 1.0 / jnp.sqrt(fan_in)
        w = jax.random.uniform(kw, (fan_in, fan_out), jnp.float32, -bound, bound)
        b = jax.random.uniform(kb, (1, fan_out), jnp.float32, -bound, bound)
        return w, b

    w1, b1 = linear(ks[0], ks[1], state_dim, hidden_dim)
    w2, b2 = linear(ks[2], ks[3], hidden_dim, hidden_dim)
    w3, b3 = linear(ks[4], ks[5], hidden_dim, 1)

    return dict(
        w1=w1, b1=b1,
        ln1_g=jnp.ones((1, hidden_dim), jnp.float32),
        ln1_b=jnp.zeros((1, hidden_dim), jnp.float32),
        w2=w2, b2=b2,
        ln2_g=jnp.ones((1, hidden_dim), jnp.float32),
        ln2_b=jnp.zeros((1, hidden_dim), jnp.float32),
        w3=w3, b3=b3,
    )


def value_net_reference(x, p):
    """Pure-JAX reference mirroring the PyTorch forward."""
    def ln(h, g, b):
        m = jnp.mean(h, -1, keepdims=True)
        v = jnp.mean((h - m) ** 2, -1, keepdims=True)
        return (h - m) / jnp.sqrt(v + LN_EPS) * g + b

    h = jnp.maximum(x @ p["w1"] + p["b1"], 0.0)
    h = ln(h, p["ln1_g"], p["ln1_b"])
    h = jnp.maximum(h @ p["w2"] + p["b2"], 0.0)
    h = ln(h, p["ln2_g"], p["ln2_b"])
    return h @ p["w3"] + p["b3"]


if __name__ == "__main__":
    key = jax.random.PRNGKey(0)
    kx, kp, kx2 = jax.random.split(key, 3)

    params = init_params(kp, STATE_DIM, HIDDEN_DIM)

    # small-shape check (single padded tile)
    B = 8
    x = jax.random.normal(kx, (B, STATE_DIM), jnp.float32)
    out = jax.block_until_ready(value_net_forward(x, params))
    ref = value_net_reference(x, params)
    assert out.shape == (B, 1), out.shape
    assert jnp.allclose(out, ref, atol=1e-4, rtol=1e-4), (
        "mismatch vs reference (B=8): max abs err "
        f"{jnp.max(jnp.abs(out - ref))}"
    )

    # ragged multi-tile check (exercises tail padding + lane-dense assembly)
    B2 = 300
    x2 = jax.random.normal(kx2, (B2, STATE_DIM), jnp.float32)
    out2 = jax.block_until_ready(value_net_forward(x2, params))
    ref2 = value_net_reference(x2, params)
    assert out2.shape == (B2, 1), out2.shape
    assert jnp.allclose(out2, ref2, atol=1e-4, rtol=1e-4), (
        "mismatch vs reference (B=300): max abs err "
        f"{jnp.max(jnp.abs(out2 - ref2))}"
    )

    print("KERNEL_OK")
</pallas_src>

<mosaic_0001>
module attributes {stable_mosaic.version = 11 : i64} {
  func.func @valuenet_kernel(%arg0: i32, %arg1: memref<128x10xf32, #tpu.memory_space<vmem>>, %arg2: memref<10x128xf32, #tpu.memory_space<vmem>>, %arg3: memref<128x128xf32, #tpu.memory_space<vmem>>, %arg4: memref<8x128xf32, #tpu.memory_space<vmem>>, %arg5: memref<1x128xf32, #tpu.memory_space<vmem>>, %arg6: memref<1xf32, #tpu.memory_space<smem>>, %arg7: memref<1x128xf32, #tpu.memory_space<vmem>>) attributes {dimension_semantics = [#tpu.dimension_semantics<parallel>], iteration_bounds = array<i64: 1>, scalar_prefetch = 0 : i64, scratch_operands = 0 : i64, tpu.core_type = #tpu.core_type<tc>, window_params = [{transform_indices = @transform_0, window_bounds = array<i64: 128, 10>}, {pipeline_mode = #tpu.pipeline_mode<synchronous>, transform_indices = @transform_1, window_bounds = array<i64: 10, 128>}, {pipeline_mode = #tpu.pipeline_mode<synchronous>, transform_indices = @transform_2, window_bounds = array<i64: 128, 128>}, {pipeline_mode = #tpu.pipeline_mode<synchronous>, transform_indices = @transform_3, window_bounds = array<i64: 8, 128>}, {pipeline_mode = #tpu.pipeline_mode<synchronous>, transform_indices = @transform_4, window_bounds = array<i64: 1, 128>}, {transform_indices = @transform_5, window_bounds = array<i64: 1>}, {transform_indices = @transform_6, window_bounds = array<i64: 1, 128>}]} {
    %c0 = arith.constant 0 : index
    %c0_0 = arith.constant 0 : index
    %0 = vector.load %arg1[%c0, %c0_0] : memref<128x10xf32, #tpu.memory_space<vmem>>, vector<128x10xf32>
    %c0_1 = arith.constant 0 : index
    %c0_2 = arith.constant 0 : index
    %1 = vector.load %arg4[%c0_1, %c0_2] : memref<8x128xf32, #tpu.memory_space<vmem>>, vector<1x128xf32>
    %c1 = arith.constant 1 : index
    %c0_3 = arith.constant 0 : index
    %2 = vector.load %arg4[%c1, %c0_3] : memref<8x128xf32, #tpu.memory_space<vmem>>, vector<1x128xf32>
    %c2 = arith.constant 2 : index
    %c0_4 = arith.constant 0 : index
    %3 = vector.load %arg4[%c2, %c0_4] : memref<8x128xf32, #tpu.memory_space<vmem>>, vector<1x128xf32>
    %c3 = arith.constant 3 : index
    %c0_5 = arith.constant 0 : index
    %4 = vector.load %arg4[%c3, %c0_5] : memref<8x128xf32, #tpu.memory_space<vmem>>, vector<1x128xf32>
    %c4 = arith.constant 4 : index
    %c0_6 = arith.constant 0 : index
    %5 = vector.load %arg4[%c4, %c0_6] : memref<8x128xf32, #tpu.memory_space<vmem>>, vector<1x128xf32>
    %c5 = arith.constant 5 : index
    %c0_7 = arith.constant 0 : index
    %6 = vector.load %arg4[%c5, %c0_7] : memref<8x128xf32, #tpu.memory_space<vmem>>, vector<1x128xf32>
    %c0_8 = arith.constant 0 : index
    %c0_9 = arith.constant 0 : index
    %7 = vector.load %arg2[%c0_8, %c0_9] : memref<10x128xf32, #tpu.memory_space<vmem>>, vector<10x128xf32>
    %cst = arith.constant dense<0.000000e+00> : vector<128x128xf32>
    %8 = tpu.matmul %0, %7, %cst {dimension_numbers = #tpu.dot_dimension_numbers<[1], [0], [0], [1], [0, 0, 1, 1], [], []>} : vector<128x10xf32>, vector<10x128xf32>, vector<128x128xf32> -> vector<128x128xf32>
    %9 = vector.broadcast %1 : vector<1x128xf32> to vector<128x128xf32>
    %10 = arith.addf %8, %9 : vector<128x128xf32>
    %cst_10 = arith.constant 0.000000e+00 : f32
    %11 = vector.broadcast %cst_10 : f32 to vector<128x128xf32>
    %12 = arith.maximumf %10, %11 : vector<128x128xf32>
    %cst_11 = arith.constant dense<0.000000e+00> : vector<128xf32>
    %13 = vector.multi_reduction <add>, %12, %cst_11 [1] : vector<128x128xf32> to vector<128xf32>
    %14 = vector.shape_cast %13 : vector<128xf32> to vector<128x1xf32>
    %cst_12 = arith.constant 1.280000e+02 : f32
    %15 = vector.broadcast %cst_12 : f32 to vector<128x1xf32>
    %16 = arith.divf %14, %15 : vector<128x1xf32>
    %17 = vector.broadcast %16 : vector<128x1xf32> to vector<128x128xf32>
    %18 = arith.subf %12, %17 : vector<128x128xf32>
    %19 = arith.mulf %18, %18 : vector<128x128xf32>
    %cst_13 = arith.constant dense<0.000000e+00> : vector<128xf32>
    %20 = vector.multi_reduction <add>, %19, %cst_13 [1] : vector<128x128xf32> to vector<128xf32>
    %21 = vector.shape_cast %20 : vector<128xf32> to vector<128x1xf32>
    %cst_14 = arith.constant 1.280000e+02 : f32
    %22 = vector.broadcast %cst_14 : f32 to vector<128x1xf32>
    %23 = arith.divf %21, %22 : vector<128x1xf32>
    %cst_15 = arith.constant 9.99999974E-6 : f32
    %24 = vector.broadcast %cst_15 : f32 to vector<128x1xf32>
    %25 = arith.addf %23, %24 : vector<128x1xf32>
    %26 = math.rsqrt %25 : vector<128x1xf32>
    %27 = vector.broadcast %26 : vector<128x1xf32> to vector<128x128xf32>
    %28 = arith.mulf %18, %27 : vector<128x128xf32>
    %29 = vector.broadcast %2 : vector<1x128xf32> to vector<128x128xf32>
    %30 = arith.mulf %28, %29 : vector<128x128xf32>
    %31 = vector.broadcast %3 : vector<1x128xf32> to vector<128x128xf32>
    %32 = arith.addf %30, %31 : vector<128x128xf32>
    %c0_16 = arith.constant 0 : index
    %c0_17 = arith.constant 0 : index
    %33 = vector.load %arg3[%c0_16, %c0_17] : memref<128x128xf32, #tpu.memory_space<vmem>>, vector<128x128xf32>
    %cst_18 = arith.constant dense<0.000000e+00> : vector<128x128xf32>
    %34 = tpu.matmul %32, %33, %cst_18 {dimension_numbers = #tpu.dot_dimension_numbers<[1], [0], [0], [1], [0, 0, 1, 1], [], []>} : vector<128x128xf32>, vector<128x128xf32>, vector<128x128xf32> -> vector<128x128xf32>
    %35 = vector.broadcast %4 : vector<1x128xf32> to vector<128x128xf32>
    %36 = arith.addf %34, %35 : vector<128x128xf32>
    %cst_19 = arith.constant 0.000000e+00 : f32
    %37 = vector.broadcast %cst_19 : f32 to vector<128x128xf32>
    %38 = arith.maximumf %36, %37 : vector<128x128xf32>
    %cst_20 = arith.constant dense<0.000000e+00> : vector<128xf32>
    %39 = vector.multi_reduction <add>, %38, %cst_20 [1] : vector<128x128xf32> to vector<128xf32>
    %40 = vector.shape_cast %39 : vector<128xf32> to vector<128x1xf32>
    %cst_21 = arith.constant 1.280000e+02 : f32
    %41 = vector.broadcast %cst_21 : f32 to vector<128x1xf32>
    %42 = arith.divf %40, %41 : vector<128x1xf32>
    %43 = vector.broadcast %42 : vector<128x1xf32> to vector<128x128xf32>
    %44 = arith.subf %38, %43 : vector<128x128xf32>
    %45 = arith.mulf %44, %44 : vector<128x128xf32>
    %cst_22 = arith.constant dense<0.000000e+00> : vector<128xf32>
    %46 = vector.multi_reduction <add>, %45, %cst_22 [1] : vector<128x128xf32> to vector<128xf32>
    %47 = vector.shape_cast %46 : vector<128xf32> to vector<128x1xf32>
    %cst_23 = arith.constant 1.280000e+02 : f32
    %48 = vector.broadcast %cst_23 : f32 to vector<128x1xf32>
    %49 = arith.divf %47, %48 : vector<128x1xf32>
    %cst_24 = arith.constant 9.99999974E-6 : f32
    %50 = vector.broadcast %cst_24 : f32 to vector<128x1xf32>
    %51 = arith.addf %49, %50 : vector<128x1xf32>
    %52 = math.rsqrt %51 : vector<128x1xf32>
    %53 = vector.broadcast %52 : vector<128x1xf32> to vector<128x128xf32>
    %54 = arith.mulf %44, %53 : vector<128x128xf32>
    %55 = vector.broadcast %5 : vector<1x128xf32> to vector<128x128xf32>
    %56 = arith.mulf %54, %55 : vector<128x128xf32>
    %57 = vector.broadcast %6 : vector<1x128xf32> to vector<128x128xf32>
    %58 = arith.addf %56, %57 : vector<128x128xf32>
    %c0_25 = arith.constant 0 : index
    %c0_26 = arith.constant 0 : index
    %59 = vector.load %arg5[%c0_25, %c0_26] : memref<1x128xf32, #tpu.memory_space<vmem>>, vector<1x128xf32>
    %60 = vector.broadcast %59 : vector<1x128xf32> to vector<128x128xf32>
    %61 = arith.mulf %58, %60 : vector<128x128xf32>
    %cst_27 = arith.constant dense<0.000000e+00> : vector<128xf32>
    %62 = vector.multi_reduction <add>, %61, %cst_27 [1] : vector<128x128xf32> to vector<128xf32>
    %c0_28 = arith.constant 0 : index
    %63 = memref.load %arg6[%c0_28] : memref<1xf32, #tpu.memory_space<smem>>
    %64 = vector.broadcast %63 : f32 to vector<128xf32>
    %65 = arith.addf %62, %64 : vector<128xf32>
    %66 = vector.shape_cast %65 : vector<128xf32> to vector<1x128xf32>
    %c0_29 = arith.constant 0 : index
    %c0_30 = arith.constant 0 : index
    %67 = vector.load %arg7[%c0_29, %c0_30] : memref<1x128xf32, #tpu.memory_space<vmem>>, vector<1x128xf32>
    tpu.vector_store %arg7[%c0_29, %c0_30], %66 {strides = array<i32>} : memref<1x128xf32, #tpu.memory_space<vmem>>, vector<1x128xf32>,
    return
  }
  func.func @transform_0(%arg0: i32) -> (i32, i32) {
    %c0_i32 = arith.constant 0 : i32
    %c0_i32_0 = arith.constant 0 : i32
    return %arg0, %c0_i32 : i32, i32
  }
  func.func @transform_1(%arg0: i32) -> (i32, i32) {
    %c0_i32 = arith.constant 0 : i32
    %c0_i32_0 = arith.constant 0 : i32
    %c0_i32_1 = arith.constant 0 : i32
    return %c0_i32, %c0_i32_0 : i32, i32
  }
  func.func @transform_2(%arg0: i32) -> (i32, i32) {
    %c0_i32 = arith.constant 0 : i32
    %c0_i32_0 = arith.constant 0 : i32
    %c0_i32_1 = arith.constant 0 : i32
    return %c0_i32, %c0_i32_0 : i32, i32
  }
  func.func @transform_3(%arg0: i32) -> (i32, i32) {
    %c0_i32 = arith.constant 0 : i32
    %c0_i32_0 = arith.constant 0 : i32
    %c0_i32_1 = arith.constant 0 : i32
    return %c0_i32, %c0_i32_0 : i32, i32
  }
  func.func @transform_4(%arg0: i32) -> (i32, i32) {
    %c0_i32 = arith.constant 0 : i32
    %c0_i32_0 = arith.constant 0 : i32
    %c0_i32_1 = arith.constant 0 : i32
    return %c0_i32, %c0_i32_0 : i32, i32
  }
  func.func @transform_5(%arg0: i32) -> i32 {
    %c0_i32 = arith.constant 0 : i32
    %c0_i32_0 = arith.constant 0 : i32
    return %c0_i32 : i32
  }
  func.func @transform_6(%arg0: i32) -> (i32, i32) {
    %c0_i32 = arith.constant 0 : i32
    %c0_i32_0 = arith.constant 0 : i32
    return %arg0, %c0_i32 : i32, i32
  }
}

</mosaic_0001>

<llo_original>
// kernel: tpu_custom_call.1
$region0: #{tpu_custom_call.1}
  #allocation0 [shape = 'u32[]', space=smem, size = 0x4, offset = 0x4, fixed_abs, tag = 'smem constant byte address 0x4 - core index']
  #allocation1 [shape = 'u32[144,128]{1,0:T(1,128)}', space=vmem, size = 0x12000, scoped, tag = 'internal scratch']
  #allocation2 [shape = 'f32[1]{0:T(128)S(6)}', space=smem, size = 0x200, scoped, tag = 'scoped memory for tpu_custom_call.1']
  %s0 = inlined_call_operand.vmem [shape: f32[128,10], index: 0, kind: input, shape index: {}]
  %s1 = inlined_call_operand.vmem [shape: f32[10,128], index: 1, kind: input, shape index: {}]
  %s2 = inlined_call_operand.vmem [shape: f32[128,128], index: 2, kind: input, shape index: {}]
  %s3 = inlined_call_operand.vmem [shape: f32[8,128], index: 3, kind: input, shape index: {}]
  %s4 = inlined_call_operand.vmem [shape: f32[1,128], index: 4, kind: input, shape index: {}]
  %s5 = inlined_call_operand.<no memory space> [shape: f32[1], index: 5, kind: input, shape index: {}]
  %s6 = inlined_call_operand.hbm [shape: f32[1,128], index: 6, kind: output, shape index: {}]
  %s7 = sld [smem:[#allocation0]]
  $region34: #{tpu_custom_call.1} parent=0
    _
  %s9 = ssub.s32 1, %s7
  %s10 = scalar_select 0, %s9, %s7
  %11 = sst [smem:[#allocation2]] %s5
  $region1: #{tpu_custom_call.1} parent=0
    #allocation3 [shape = 'u8[512]{0}', space=vmem, size = 0x400, scoped, tag = 'output window, operand 0, single buffered']
    #allocation4 [shape = 's32[1]{0}', space=sflag, size = 0x4, scoped, tag = 'scoped memory for tpu_custom_call.1']
    %12 = vsyncpa [#allocation4], 0
    // Predicated region
    $region2: #{tpu_custom_call.1} parent=1 // pred_check
      _
    $region3: #{tpu_custom_call.1} parent=1 // pred_check_branch
      %14 = sbr.rel (0) target = $region5
    $region4: #{tpu_custom_call.1} parent=1 // pred_region
      _
    $region5: #{tpu_custom_call.1} parent=1 // pred_fallthru
      _
    // Predicated region
    $region6: #{tpu_custom_call.1} parent=1 // pred_check
      _
    $region7: #{tpu_custom_call.1} parent=1 // pred_check_branch
      %16 = sbr.rel (0) target = $region9
    $region8: #{tpu_custom_call.1} parent=1 // pred_region
      _
    $region9: #{tpu_custom_call.1} parent=1 // pred_fallthru
      _
    // Predicated region
    $region10: #{tpu_custom_call.1} parent=1 // pred_check
      _
    $region11: #{tpu_custom_call.1} parent=1 // pred_check_branch
      %18 = sbr.rel (0) target = $region13
    $region12: #{tpu_custom_call.1} parent=1 // pred_region
      _
    $region13: #{tpu_custom_call.1} parent=1 // pred_fallthru
      _
    // Predicated region
    $region14: #{tpu_custom_call.1} parent=1 // pred_check
      _
    $region15: #{tpu_custom_call.1} parent=1 // pred_check_branch
      %20 = sbr.rel (0) target = $region17
    $region16: #{tpu_custom_call.1} parent=1 // pred_region
      _
    $region17: #{tpu_custom_call.1} parent=1 // pred_fallthru
      _
    // Predicated region
    $region18: #{tpu_custom_call.1} parent=1 // pred_check
      _
    $region19: #{tpu_custom_call.1} parent=1 // pred_check_branch
      %22 = sbr.rel (0) target = $region21
    $region20: #{tpu_custom_call.1} parent=1 // pred_region
      _
    $region21: #{tpu_custom_call.1} parent=1 // pred_fallthru
      _
    // Predicated region
    $region22: #{tpu_custom_call.1} parent=1 // pred_check
      _
    $region23: #{tpu_custom_call.1} parent=1 // pred_check_branch
      %24 = sbr.rel (0) target = $region25
    $region24: #{tpu_custom_call.1} parent=1 // pred_region
      _
    $region25: #{tpu_custom_call.1} parent=1 // pred_fallthru
      _
    %v25 = vld [vmem:[%s0] sm:$0xff]
    %v26 = vld [vmem:[%s0 + $0x8] sm:$0xff]
    %v27 = vld [vmem:[%s0 + $0x10] sm:$0xff]
    %v28 = vld [vmem:[%s0 + $0x18] sm:$0xff]
    %v29 = vld [vmem:[%s0 + $0x20] sm:$0xff]
    %v30 = vld [vmem:[%s0 + $0x28] sm:$0xff]
    %v31 = vld [vmem:[%s0 + $0x30] sm:$0xff]
    %v32 = vld [vmem:[%s0 + $0x38] sm:$0xff]
    %v33 = vld [vmem:[%s0 + $0x40] sm:$0xff]
    %v34 = vld [vmem:[%s0 + $0x48] sm:$0xff]
    %v35 = vld [vmem:[%s0 + $0x50] sm:$0xff]
    %v36 = vld [vmem:[%s0 + $0x58] sm:$0xff]
    %v37 = vld [vmem:[%s0 + $0x60] sm:$0xff]
    %v38 = vld [vmem:[%s0 + $0x68] sm:$0xff]
    %v39 = vld [vmem:[%s0 + $0x70] sm:$0xff]
    %v40 = vld [vmem:[%s0 + $0x78] sm:$0xff]
    %v41 = vld [vmem:[%s3] sm:$0x1]
    %v42 = vld [vmem:[%s3 + $0x1] sm:$0x1]
    %v43 = vld [vmem:[%s3 + $0x2] sm:$0x1]
    %v44 = vld [vmem:[%s3 + $0x3] sm:$0x1]
    %v45 = vld [vmem:[%s3 + $0x4] sm:$0x1]
    %v46 = vld [vmem:[%s3 + $0x5] sm:$0x1]
    %v47 = vld [vmem:[%s1] sm:$0xff]
    %v48 = vld [vmem:[%s1 + $0x8] sm:$0x3]
    %v49 = vlaneseq
    %v50 = vshrl.u32 %v49, 7
    %v51 = vsub.s32 0, %v50
    %v52 = vrot.slane %v41, %v51
    %vm53 = vcmask 80896
    %v55 = vsel %vm53, %v25, 0
    %v58 = vsel %vm53, %v26, 0
    %v61 = vsel %vm53, %v27, 0
    %v64 = vsel %vm53, %v28, 0
    %v67 = vsel %vm53, %v29, 0
    %v70 = vsel %vm53, %v30, 0
    %v73 = vsel %vm53, %v31, 0
    %v76 = vsel %vm53, %v32, 0
    %v79 = vsel %vm53, %v33, 0
    %v82 = vsel %vm53, %v34, 0
    %v85 = vsel %vm53, %v35, 0
    %v88 = vsel %vm53, %v36, 0
    %v91 = vsel %vm53, %v37, 0
    %v94 = vsel %vm53, %v38, 0
    %v97 = vsel %vm53, %v39, 0
    %v100 = vsel %vm53, %v40, 0
    %vm102 = vcmask 1041408
    %v104 = vsel %vm102, %v48, 0
    %106 = vmatprep.subr.mxu0 0.0
    %107 = vmatpush1.msra.mxu0 %v47
    %108 = vmatprep.subr.mxu0 0.0
    %109 = vmatpush1.msra.mxu0 %v104
    %110 = vmatprep.subr.mxu0 0.0
    %111 = vmatpush1.msra.mxu0 0.0
    %112 = vmatprep.subr.mxu0 0.0
    %113 = vmatpush1.msra.mxu0 0.0
    %114 = vmatprep.subr.mxu0 0.0
    %115 = vmatpush1.msra.mxu0 0.0
    %116 = vmatprep.subr.mxu0 0.0
    %117 = vmatpush1.msra.mxu0 0.0
    %118 = vmatprep.subr.mxu0 0.0
    %119 = vmatpush1.msra.mxu0 0.0
    %120 = vmatprep.subr.mxu0 0.0
    %121 = vmatpush1.msra.mxu0 0.0
    %122 = vmatprep.subr.mxu0 0.0
    %123 = vmatpush1.msra.mxu0 0.0
    %124 = vmatprep.subr.mxu0 0.0
    %125 = vmatpush1.msra.mxu0 0.0
    %126 = vmatprep.subr.mxu0 0.0
    %127 = vmatpush1.msra.mxu0 0.0
    %128 = vmatprep.subr.mxu0 0.0
    %129 = vmatpush1.msra.mxu0 0.0
    %130 = vmatprep.subr.mxu0 0.0
    %131 = vmatpush1.msra.mxu0 0.0
    %132 = vmatprep.subr.mxu0 0.0
    %133 = vmatpush1.msra.mxu0 0.0
    %134 = vmatprep.subr.mxu0 0.0
    %135 = vmatpush1.msra.mxu0 0.0
    %136 = vmatprep.subr.mxu0 0.0
    %137 = vmatpush1.msra.mxu0 0.0
    %138 = vmatprep.subr.mxu0 0.0
    %139 = vmatpush1.msra.mxu0 0.0
    %140 = vmatprep.subr.mxu0 0.0
    %141 = vmatpush1.msra.mxu0 0.0
    %142 = vmatprep.subr.mxu0 0.0
    %143 = vmatpush1.msra.mxu0 0.0
    %144 = vmatprep.subr.mxu0 0.0
    %145 = vmatpush1.msra.mxu0 0.0
    %146 = vmatprep.subr.mxu0 0.0
    %147 = vmatpush1.msra.mxu0 0.0
    %148 = vmatprep.subr.mxu0 0.0
    %149 = vmatpush1.msra.mxu0 0.0
    %150 = vmatprep.subr.mxu0 0.0
    %151 = vmatpush1.msra.mxu0 0.0
    %152 = vmatprep.subr.mxu0 0.0
    %153 = vmatpush1.msra.mxu0 0.0
    %154 = vmatprep.subr.mxu0 0.0
    %155 = vmatpush1.msra.mxu0 0.0
    %156 = vmatprep.subr.mxu0 0.0
    %157 = vmatpush1.msra.mxu0 0.0
    %158 = vmatprep.subr.mxu0 0.0
    %159 = vmatpush1.msra.mxu0 0.0
    %160 = vmatprep.subr.mxu0 0.0
    %161 = vmatpush1.msra.mxu0 0.0
    %162 = vmatprep.subr.mxu0 0.0
    %163 = vmatpush1.msra.mxu0 0.0
    %164 = vmatprep.subr.mxu0 0.0
    %165 = vmatpush1.msra.mxu0 0.0
    %166 = vmatprep.subr.mxu0 0.0
    %167 = vmatpush1.msra.mxu0 0.0
    %168 = vmatprep.subr.mxu0 0.0
    %169 = vmatpush1.msra.mxu0 0.0
    %170 = vmatprep.mubr.f32.mxu0 0.0
    %171 = vmatmul.mubr.f32.gmra.mrb[0].mxu0 %v55
    %v172 = vpop.f32.mrb[0].mxu0
    %v173 = vadd.f32 %v52, %v172
    %v174 = vpop.f32.mrb[0].mxu0
    %175 = vmatprep.mubr.f32.mxu0 0.0
    %176 = vmatmul.mubr.f32.gmra.mrb[0].mxu0 %v58
    %v177 = vpop.f32.mrb[0].mxu0
    %v178 = vadd.f32 %v52, %v177
    %v179 = vpop.f32.mrb[0].mxu0
    %180 = vmatprep.mubr.f32.mxu0 0.0
    %181 = vmatmul.mubr.f32.gmra.mrb[0].mxu0 %v61
    %v182 = vpop.f32.mrb[0].mxu0
    %v183 = vadd.f32 %v52, %v182
    %v184 = vpop.f32.mrb[0].mxu0
    %185 = vmatprep.mubr.f32.mxu0 0.0
    %186 = vmatmul.mubr.f32.gmra.mrb[0].mxu0 %v64
    %v187 = vpop.f32.mrb[0].mxu0
    %v188 = vadd.f32 %v52, %v187
    %v189 = vpop.f32.mrb[0].mxu0
    %190 = vmatprep.mubr.f32.mxu0 0.0
    %191 = vmatmul.mubr.f32.gmra.mrb[0].mxu0 %v67
    %v192 = vpop.f32.mrb[0].mxu0
    %v193 = vadd.f32 %v52, %v192
    %v194 = vpop.f32.mrb[0].mxu0
    %195 = vmatprep.mubr.f32.mxu0 0.0
    %196 = vmatmul.mubr.f32.gmra.mrb[0].mxu0 %v70
    %v197 = vpop.f32.mrb[0].mxu0
    %v198 = vadd.f32 %v52, %v197
    %v199 = vpop.f32.mrb[0].mxu0
    %200 = vmatprep.mubr.f32.mxu0 0.0
    %201 = vmatmul.mubr.f32.gmra.mrb[0].mxu0 %v73
    %v202 = vpop.f32.mrb[0].mxu0
    %v203 = vadd.f32 %v52, %v202
    %v204 = vpop.f32.mrb[0].mxu0
    %205 = vmatprep.mubr.f32.mxu0 0.0
    %206 = vmatmul.mubr.f32.gmra.mrb[0].mxu0 %v76
    %v207 = vpop.f32.mrb[0].mxu0
    %v208 = vadd.f32 %v52, %v207
    %v209 = vpop.f32.mrb[0].mxu0
    %210 = vmatprep.mubr.f32.mxu0 0.0
    %211 = vmatmul.mubr.f32.gmra.mrb[0].mxu0 %v79
    %v212 = vpop.f32.mrb[0].mxu0
    %v213 = vadd.f32 %v52, %v212
    %v214 = vpop.f32.mrb[0].mxu0
    %215 = vmatprep.mubr.f32.mxu0 0.0
    %216 = vmatmul.mubr.f32.gmra.mrb[0].mxu0 %v82
    %v217 = vpop.f32.mrb[0].mxu0
    %v218 = vadd.f32 %v52, %v217
    %v219 = vpop.f32.mrb[0].mxu0
    %220 = vmatprep.mubr.f32.mxu0 0.0
    %221 = vmatmul.mubr.f32.gmra.mrb[0].mxu0 %v85
    %v222 = vpop.f32.mrb[0].mxu0
    %v223 = vadd.f32 %v52, %v222
    %v224 = vpop.f32.mrb[0].mxu0
    %225 = vmatprep.mubr.f32.mxu0 0.0
    %226 = vmatmul.mubr.f32.gmra.mrb[0].mxu0 %v88
    %v227 = vpop.f32.mrb[0].mxu0
    %v228 = vadd.f32 %v52, %v227
    %v229 = vpop.f32.mrb[0].mxu0
    %230 = vmatprep.mubr.f32.mxu0 0.0
    %231 = vmatmul.mubr.f32.gmra.mrb[0].mxu0 %v91
    %v232 = vpop.f32.mrb[0].mxu0
    %v233 = vadd.f32 %v52, %v232
    %v234 = vpop.f32.mrb[0].mxu0
    %235 = vmatprep.mubr.f32.mxu0 0.0
    %236 = vmatmul.mubr.f32.gmra.mrb[0].mxu0 %v94
    %v237 = vpop.f32.mrb[0].mxu0
    %v238 = vadd.f32 %v52, %v237
    %v239 = vpop.f32.mrb[0].mxu0
    %240 = vmatprep.mubr.f32.mxu0 0.0
    %241 = vmatmul.mubr.f32.gmra.mrb[0].mxu0 %v97
    %v242 = vpop.f32.mrb[0].mxu0
    %v243 = vadd.f32 %v52, %v242
    %v244 = vpop.f32.mrb[0].mxu0
    %245 = vmatprep.mubr.f32.mxu0 0.0
    %246 = vmatmul.mubr.f32.gmra.mrb[0].mxu0 %v100
    %v247 = vpop.f32.mrb[0].mxu0
    %v248 = vadd.f32 %v52, %v247
    %v249 = vpop.f32.mrb[0].mxu0
    %250 = vdwg.mxu0
    %v251 = vmax.f32 %v173, 0.0
    %v252 = vmax.f32 %v178, 0.0
    %v253 = vmax.f32 %v183, 0.0
    %v254 = vmax.f32 %v188, 0.0
    %v255 = vmax.f32 %v193, 0.0
    %v256 = vmax.f32 %v198, 0.0
    %v257 = vmax.f32 %v203, 0.0
    %v258 = vmax.f32 %v208, 0.0
    %v259 = vmax.f32 %v213, 0.0
    %v260 = vmax.f32 %v218, 0.0
    %v261 = vmax.f32 %v223, 0.0
    %v262 = vmax.f32 %v228, 0.0
    %v263 = vmax.f32 %v233, 0.0
    %v264 = vmax.f32 %v238, 0.0
    %v265 = vmax.f32 %v243, 0.0
    %v266 = vmax.f32 %v248, 0.0
    %267 = vadd.xlane.f32.xlu0 %v251
    %v268 = vpop.xlane.xlu0 %267
    %269 = vadd.xlane.f32.xlu0 %v252
    %v270 = vpop.xlane.xlu0 %269
    %271 = vadd.xlane.f32.xlu0 %v253
    %v272 = vpop.xlane.xlu0 %271
    %273 = vadd.xlane.f32.xlu0 %v254
    %v274 = vpop.xlane.xlu0 %273
    %275 = vadd.xlane.f32.xlu0 %v255
    %v276 = vpop.xlane.xlu0 %275
    %277 = vadd.xlane.f32.xlu0 %v256
    %v278 = vpop.xlane.xlu0 %277
    %279 = vadd.xlane.f32.xlu0 %v257
    %v280 = vpop.xlane.xlu0 %279
    %281 = vadd.xlane.f32.xlu0 %v258
    %v282 = vpop.xlane.xlu0 %281
    %283 = vadd.xlane.f32.xlu0 %v259
    %v284 = vpop.xlane.xlu0 %283
    %285 = vadd.xlane.f32.xlu0 %v260
    %v286 = vpop.xlane.xlu0 %285
    %287 = vadd.xlane.f32.xlu0 %v261
    %v288 = vpop.xlane.xlu0 %287
    %289 = vadd.xlane.f32.xlu0 %v262
    %v290 = vpop.xlane.xlu0 %289
    %291 = vadd.xlane.f32.xlu0 %v263
    %v292 = vpop.xlane.xlu0 %291
    %293 = vadd.xlane.f32.xlu0 %v264
    %v294 = vpop.xlane.xlu0 %293
    %295 = vadd.xlane.f32.xlu0 %v265
    %v296 = vpop.xlane.xlu0 %295
    %297 = vadd.xlane.f32.xlu0 %v266
    %v298 = vpop.xlane.xlu0 %297
    %v299 = vrcp.pop 128.0
    %v300 = vmul.f32 %v268, %v299
    %v301 = vmul.f32 %v270, %v299
    %v302 = vmul.f32 %v272, %v299
    %v303 = vmul.f32 %v274, %v299
    %v304 = vmul.f32 %v276, %v299
    %v305 = vmul.f32 %v278, %v299
    %v306 = vmul.f32 %v280, %v299
    %v307 = vmul.f32 %v282, %v299
    %v308 = vmul.f32 %v284, %v299
    %v309 = vmul.f32 %v286, %v299
    %v310 = vmul.f32 %v288, %v299
    %v311 = vmul.f32 %v290, %v299
    %v312 = vmul.f32 %v292, %v299
    %v313 = vmul.f32 %v294, %v299
    %v314 = vmul.f32 %v296, %v299
    %v315 = vmul.f32 %v298, %v299
    %v316 = vsub.f32 %v251, %v300
    %v317 = vsub.f32 %v252, %v301
    %v318 = vsub.f32 %v253, %v302
    %v319 = vsub.f32 %v254, %v303
    %v320 = vsub.f32 %v255, %v304
    %v321 = vsub.f32 %v256, %v305
    %v322 = vsub.f32 %v257, %v306
    %v323 = vsub.f32 %v258, %v307
    %v324 = vsub.f32 %v259, %v308
    %v325 = vsub.f32 %v260, %v309
    %v326 = vsub.f32 %v261, %v310
    %v327 = vsub.f32 %v262, %v311
    %v328 = vsub.f32 %v263, %v312
    %v329 = vsub.f32 %v264, %v313
    %v330 = vsub.f32 %v265, %v314
    %v331 = vsub.f32 %v266, %v315
    %v332 = vmul.f32 %v316, %v316
    %v333 = vmul.f32 %v317, %v317
    %v334 = vmul.f32 %v318, %v318
    %v335 = vmul.f32 %v319, %v319
    %v336 = vmul.f32 %v320, %v320
    %v337 = vmul.f32 %v321, %v321
    %v338 = vmul.f32 %v322, %v322
    %v339 = vmul.f32 %v323, %v323
    %v340 = vmul.f32 %v324, %v324
    %v341 = vmul.f32 %v325, %v325
    %v342 = vmul.f32 %v326, %v326
    %v343 = vmul.f32 %v327, %v327
    %v344 = vmul.f32 %v328, %v328
    %v345 = vmul.f32 %v329, %v329
    %v346 = vmul.f32 %v330, %v330
    %v347 = vmul.f32 %v331, %v331
    %348 = vadd.xlane.f32.xlu0 %v332
    %v349 = vpop.xlane.xlu0 %348
    %350 = vadd.xlane.f32.xlu0 %v333
    %v351 = vpop.xlane.xlu0 %350
    %352 = vadd.xlane.f32.xlu0 %v334
    %v353 = vpop.xlane.xlu0 %352
    %354 = vadd.xlane.f32.xlu0 %v335
    %v355 = vpop.xlane.xlu0 %354
    %356 = vadd.xlane.f32.xlu0 %v336
    %v357 = vpop.xlane.xlu0 %356
    %358 = vadd.xlane.f32.xlu0 %v337
    %v359 = vpop.xlane.xlu0 %358
    %360 = vadd.xlane.f32.xlu0 %v338
    %v361 = vpop.xlane.xlu0 %360
    %362 = vadd.xlane.f32.xlu0 %v339
    %v363 = vpop.xlane.xlu0 %362
    %364 = vadd.xlane.f32.xlu0 %v340
    %v365 = vpop.xlane.xlu0 %364
    %366 = vadd.xlane.f32.xlu0 %v341
    %v367 = vpop.xlane.xlu0 %366
    %368 = vadd.xlane.f32.xlu0 %v342
    %v369 = vpop.xlane.xlu0 %368
    %370 = vadd.xlane.f32.xlu0 %v343
    %v371 = vpop.xlane.xlu0 %370
    %372 = vadd.xlane.f32.xlu0 %v344
    %v373 = vpop.xlane.xlu0 %372
    %374 = vadd.xlane.f32.xlu0 %v345
    %v375 = vpop.xlane.xlu0 %374
    %376 = vadd.xlane.f32.xlu0 %v346
    %v377 = vpop.xlane.xlu0 %376
    %378 = vadd.xlane.f32.xlu0 %v347
    %v379 = vpop.xlane.xlu0 %378
    %v380 = vmul.f32 %v349, %v299
    %v381 = vmul.f32 %v351, %v299
    %v382 = vmul.f32 %v353, %v299
    %v383 = vmul.f32 %v355, %v299
    %v384 = vmul.f32 %v357, %v299
    %v385 = vmul.f32 %v359, %v299
    %v386 = vmul.f32 %v361, %v299
    %v387 = vmul.f32 %v363, %v299
    %v388 = vmul.f32 %v365, %v299
    %v389 = vmul.f32 %v367, %v299
    %v390 = vmul.f32 %v369, %v299
    %v391 = vmul.f32 %v371, %v299
    %v392 = vmul.f32 %v373, %v299
    %v393 = vmul.f32 %v375, %v299
    %v394 = vmul.f32 %v377, %v299
    %v395 = vmul.f32 %v379, %v299
    %v396 = vadd.f32 %v380, 1e-05
    %v397 = vadd.f32 %v381, 1e-05
    %v398 = vadd.f32 %v382, 1e-05
    %v399 = vadd.f32 %v383, 1e-05
    %v400 = vadd.f32 %v384, 1e-05
    %v401 = vadd.f32 %v385, 1e-05
    %v402 = vadd.f32 %v386, 1e-05
    %v403 = vadd.f32 %v387, 1e-05
    %v404 = vadd.f32 %v388, 1e-05
    %v405 = vadd.f32 %v389, 1e-05
    %v406 = vadd.f32 %v390, 1e-05
    %v407 = vadd.f32 %v391, 1e-05
    %v408 = vadd.f32 %v392, 1e-05
    %v409 = vadd.f32 %v393, 1e-05
    %v410 = vadd.f32 %v394, 1e-05
    %v411 = vadd.f32 %v395, 1e-05
    %v412 = vrsqrt.pop %v396
    %v413 = vrsqrt.pop %v397
    %v414 = vrsqrt.pop %v398
    %v415 = vrsqrt.pop %v399
    %v416 = vrsqrt.pop %v400
    %v417 = vrsqrt.pop %v401
    %v418 = vrsqrt.pop %v402
    %v419 = vrsqrt.pop %v403
    %v420 = vrsqrt.pop %v404
    %v421 = vrsqrt.pop %v405
    %v422 = vrsqrt.pop %v406
    %v423 = vrsqrt.pop %v407
    %v424 = vrsqrt.pop %v408
    %v425 = vrsqrt.pop %v409
    %v426 = vrsqrt.pop %v410
    %v427 = vrsqrt.pop %v411
    %v428 = vmul.f32 %v316, %v412
    %v429 = vmul.f32 %v317, %v413
    %v430 = vmul.f32 %v318, %v414
    %v431 = vmul.f32 %v319, %v415
    %v432 = vmul.f32 %v320, %v416
    %v433 = vmul.f32 %v321, %v417
    %v434 = vmul.f32 %v322, %v418
    %v435 = vmul.f32 %v323, %v419
    %v436 = vmul.f32 %v324, %v420
    %v437 = vmul.f32 %v325, %v421
    %v438 = vmul.f32 %v326, %v422
    %v439 = vmul.f32 %v327, %v423
    %v440 = vmul.f32 %v328, %v424
    %v441 = vmul.f32 %v329, %v425
    %v442 = vmul.f32 %v330, %v426
    %v443 = vmul.f32 %v331, %v427
    %v444 = vlaneseq
    %v445 = vshrl.u32 %v444, 7
    %v446 = vsub.s32 0, %v445
    %v447 = vrot.slane %v42, %v446
    %v448 = vmul.f32 %v428, %v447
    %v449 = vmul.f32 %v429, %v447
    %v450 = vmul.f32 %v430, %v447
    %v451 = vmul.f32 %v431, %v447
    %v452 = vmul.f32 %v432, %v447
    %v453 = vmul.f32 %v433, %v447
    %v454 = vmul.f32 %v434, %v447
    %v455 = vmul.f32 %v435, %v447
    %v456 = vmul.f32 %v436, %v447
    %v457 = vmul.f32 %v437, %v447
    %v458 = vmul.f32 %v438, %v447
    %v459 = vmul.f32 %v439, %v447
    %v460 = vmul.f32 %v440, %v447
    %v461 = vmul.f32 %v441, %v447
    %v462 = vmul.f32 %v442, %v447
    %v463 = vmul.f32 %v443, %v447
    %v464 = vlaneseq
    %v465 = vshrl.u32 %v464, 7
    %v466 = vsub.s32 0, %v465
    %v467 = vrot.slane %v43, %v466
    %v468 = vadd.f32 %v448, %v467
    %v469 = vadd.f32 %v449, %v467
    %v470 = vadd.f32 %v450, %v467
    %v471 = vadd.f32 %v451, %v467
    %v472 = vadd.f32 %v452, %v467
    %v473 = vadd.f32 %v453, %v467
    %v474 = vadd.f32 %v454, %v467
    %v475 = vadd.f32 %v455, %v467
    %v476 = vadd.f32 %v456, %v467
    %v477 = vadd.f32 %v457, %v467
    %v478 = vadd.f32 %v458, %v467
    %v479 = vadd.f32 %v459, %v467
    %v480 = vadd.f32 %v460, %v467
    %v481 = vadd.f32 %v461, %v467
    %v482 = vadd.f32 %v462, %v467
    %v483 = vadd.f32 %v463, %v467
    %v484 = vld [vmem:[%s2] sm:$0xff]
    %v485 = vld [vmem:[%s2 + $0x8] sm:$0xff]
    %v486 = vld [vmem:[%s2 + $0x10] sm:$0xff]
    %v487 = vld [vmem:[%s2 + $0x18] sm:$0xff]
    %v488 = vld [vmem:[%s2 + $0x20] sm:$0xff]
    %v489 = vld [vmem:[%s2 + $0x28] sm:$0xff]
    %v490 = vld [vmem:[%s2 + $0x30] sm:$0xff]
    %v491 = vld [vmem:[%s2 + $0x38] sm:$0xff]
    %v492 = vld [vmem:[%s2 + $0x40] sm:$0xff]
    %v493 = vld [vmem:[%s2 + $0x48] sm:$0xff]
    %v494 = vld [vmem:[%s2 + $0x50] sm:$0xff]
    %v495 = vld [vmem:[%s2 + $0x58] sm:$0xff]
    %v496 = vld [vmem:[%s2 + $0x60] sm:$0xff]
    %v497 = vld [vmem:[%s2 + $0x68] sm:$0xff]
    %v498 = vld [vmem:[%s2 + $0x70] sm:$0xff]
    %v499 = vld [vmem:[%s2 + $0x78] sm:$0xff]
    %v500 = vlaneseq
    %v501 = vshrl.u32 %v500, 7
    %v502 = vsub.s32 0, %v501
    %v503 = vrot.slane %v44, %v502
    %504 = vmatprep.subr.mxu0 0.0
    %505 = vmatpush1.msra.mxu0 %v484
    %506 = vmatprep.subr.mxu0 0.0
    %507 = vmatpush1.msra.mxu0 %v485
    %508 = vmatprep.subr.mxu0 0.0
    %509 = vmatpush1.msra.mxu0 %v486
    %510 = vmatprep.subr.mxu0 0.0
    %511 = vmatpush1.msra.mxu0 %v487
    %512 = vmatprep.subr.mxu0 0.0
    %513 = vmatpush1.msra.mxu0 %v488
    %514 = vmatprep.subr.mxu0 0.0
    %515 = vmatpush1.msra.mxu0 %v489
    %516 = vmatprep.subr.mxu0 0.0
    %517 = vmatpush1.msra.mxu0 %v490
    %518 = vmatprep.subr.mxu0 0.0
    %519 = vmatpush1.msra.mxu0 %v491
    %520 = vmatprep.subr.mxu0 0.0
    %521 = vmatpush1.msra.mxu0 %v492
    %522 = vmatprep.subr.mxu0 0.0
    %523 = vmatpush1.msra.mxu0 %v493
    %524 = vmatprep.subr.mxu0 0.0
    %525 = vmatpush1.msra.mxu0 %v494
    %526 = vmatprep.subr.mxu0 0.0
    %527 = vmatpush1.msra.mxu0 %v495
    %528 = vmatprep.subr.mxu0 0.0
    %529 = vmatpush1.msra.mxu0 %v496
    %530 = vmatprep.subr.mxu0 0.0
    %531 = vmatpush1.msra.mxu0 %v497
    %532 = vmatprep.subr.mxu0 0.0
    %533 = vmatpush1.msra.mxu0 %v498
    %534 = vmatprep.subr.mxu0 0.0
    %535 = vmatpush1.msra.mxu0 %v499
    %536 = vmatprep.subr.mxu0 0.0
    %537 = vmatpush1.msra.mxu0 0.0
    %538 = vmatprep.subr.mxu0 0.0
    %539 = vmatpush1.msra.mxu0 0.0
    %540 = vmatprep.subr.mxu0 0.0
    %541 = vmatpush1.msra.mxu0 0.0
    %542 = vmatprep.subr.mxu0 0.0
    %543 = vmatpush1.msra.mxu0 0.0
    %544 = vmatprep.subr.mxu0 0.0
    %545 = vmatpush1.msra.mxu0 0.0
    %546 = vmatprep.subr.mxu0 0.0
    %547 = vmatpush1.msra.mxu0 0.0
    %548 = vmatprep.subr.mxu0 0.0
    %549 = vmatpush1.msra.mxu0 0.0
    %550 = vmatprep.subr.mxu0 0.0
    %551 = vmatpush1.msra.mxu0 0.0
    %552 = vmatprep.subr.mxu0 0.0
    %553 = vmatpush1.msra.mxu0 0.0
    %554 = vmatprep.subr.mxu0 0.0
    %555 = vmatpush1.msra.mxu0 0.0
    %556 = vmatprep.subr.mxu0 0.0
    %557 = vmatpush1.msra.mxu0 0.0
    %558 = vmatprep.subr.mxu0 0.0
    %559 = vmatpush1.msra.mxu0 0.0
    %560 = vmatprep.subr.mxu0 0.0
    %561 = vmatpush1.msra.mxu0 0.0
    %562 = vmatprep.subr.mxu0 0.0
    %563 = vmatpush1.msra.mxu0 0.0
    %564 = vmatprep.subr.mxu0 0.0
    %565 = vmatpush1.msra.mxu0 0.0
    %566 = vmatprep.subr.mxu0 0.0
    %567 = vmatpush1.msra.mxu0 0.0
    %568 = vmatprep.mubr.f32.mxu0 0.0
    %569 = vmatmul.mubr.f32.gmra.mrb[0].mxu0 %v468
    %v570 = vpop.f32.mrb[0].mxu0
    %v571 = vadd.f32 %v503, %v570
    %v572 = vpop.f32.mrb[0].mxu0
    %573 = vmatprep.mubr.f32.mxu0 0.0
    %574 = vmatmul.mubr.f32.gmra.mrb[0].mxu0 %v469
    %v575 = vpop.f32.mrb[0].mxu0
    %v576 = vadd.f32 %v503, %v575
    %v577 = vpop.f32.mrb[0].mxu0
    %578 = vmatprep.mubr.f32.mxu0 0.0
    %579 = vmatmul.mubr.f32.gmra.mrb[0].mxu0 %v470
    %v580 = vpop.f32.mrb[0].mxu0
    %v581 = vadd.f32 %v503, %v580
    %v582 = vpop.f32.mrb[0].mxu0
    %583 = vmatprep.mubr.f32.mxu0 0.0
    %584 = vmatmul.mubr.f32.gmra.mrb[0].mxu0 %v471
    %v585 = vpop.f32.mrb[0].mxu0
    %v586 = vadd.f32 %v503, %v585
    %v587 = vpop.f32.mrb[0].mxu0
    %588 = vmatprep.mubr.f32.mxu0 0.0
    %589 = vmatmul.mubr.f32.gmra.mrb[0].mxu0 %v472
    %v590 = vpop.f32.mrb[0].mxu0
    %v591 = vadd.f32 %v503, %v590
    %v592 = vpop.f32.mrb[0].mxu0
    %593 = vmatprep.mubr.f32.mxu0 0.0
    %594 = vmatmul.mubr.f32.gmra.mrb[0].mxu0 %v473
    %v595 = vpop.f32.mrb[0].mxu0
    %v596 = vadd.f32 %v503, %v595
    %v597 = vpop.f32.mrb[0].mxu0
    %598 = vmatprep.mubr.f32.mxu0 0.0
    %599 = vmatmul.mubr.f32.gmra.mrb[0].mxu0 %v474
    %v600 = vpop.f32.mrb[0].mxu0
    %v601 = vadd.f32 %v503, %v600
    %v602 = vpop.f32.mrb[0].mxu0
    %603 = vmatprep.mubr.f32.mxu0 0.0
    %604 = vmatmul.mubr.f32.gmra.mrb[0].mxu0 %v475
    %v605 = vpop.f32.mrb[0].mxu0
    %v606 = vadd.f32 %v503, %v605
    %v607 = vpop.f32.mrb[0].mxu0
    %608 = vmatprep.mubr.f32.mxu0 0.0
    %609 = vmatmul.mubr.f32.gmra.mrb[0].mxu0 %v476
    %v610 = vpop.f32.mrb[0].mxu0
    %v611 = vadd.f32 %v503, %v610
    %v612 = vpop.f32.mrb[0].mxu0
    %613 = vmatprep.mubr.f32.mxu0 0.0
    %614 = vmatmul.mubr.f32.gmra.mrb[0].mxu0 %v477
    %v615 = vpop.f32.mrb[0].mxu0
    %v616 = vadd.f32 %v503, %v615
    %v617 = vpop.f32.mrb[0].mxu0
    %618 = vmatprep.mubr.f32.mxu0 0.0
    %619 = vmatmul.mubr.f32.gmra.mrb[0].mxu0 %v478
    %v620 = vpop.f32.mrb[0].mxu0
    %v621 = vadd.f32 %v503, %v620
    %v622 = vpop.f32.mrb[0].mxu0
    %623 = vmatprep.mubr.f32.mxu0 0.0
    %624 = vmatmul.mubr.f32.gmra.mrb[0].mxu0 %v479
    %v625 = vpop.f32.mrb[0].mxu0
    %v626 = vadd.f32 %v503, %v625
    %v627 = vpop.f32.mrb[0].mxu0
    %628 = vmatprep.mubr.f32.mxu0 0.0
    %629 = vmatmul.mubr.f32.gmra.mrb[0].mxu0 %v480
    %v630 = vpop.f32.mrb[0].mxu0
    %v631 = vadd.f32 %v503, %v630
    %v632 = vpop.f32.mrb[0].mxu0
    %633 = vmatprep.mubr.f32.mxu0 0.0
    %634 = vmatmul.mubr.f32.gmra.mrb[0].mxu0 %v481
    %v635 = vpop.f32.mrb[0].mxu0
    %v636 = vadd.f32 %v503, %v635
    %v637 = vpop.f32.mrb[0].mxu0
    %638 = vmatprep.mubr.f32.mxu0 0.0
    %639 = vmatmul.mubr.f32.gmra.mrb[0].mxu0 %v482
    %v640 = vpop.f32.mrb[0].mxu0
    %v641 = vadd.f32 %v503, %v640
    %v642 = vpop.f32.mrb[0].mxu0
    %643 = vmatprep.mubr.f32.mxu0 0.0
    %644 = vmatmul.mubr.f32.gmra.mrb[0].mxu0 %v483
    %v645 = vpop.f32.mrb[0].mxu0
    %v646 = vadd.f32 %v503, %v645
    %v647 = vpop.f32.mrb[0].mxu0
    %648 = vdwg.mxu0
    %v649 = vmax.f32 %v571, 0.0
    %v650 = vmax.f32 %v576, 0.0
    %v651 = vmax.f32 %v581, 0.0
    %v652 = vmax.f32 %v586, 0.0
    %v653 = vmax.f32 %v591, 0.0
    %v654 = vmax.f32 %v596, 0.0
    %v655 = vmax.f32 %v601, 0.0
    %v656 = vmax.f32 %v606, 0.0
    %v657 = vmax.f32 %v611, 0.0
    %v658 = vmax.f32 %v616, 0.0
    %v659 = vmax.f32 %v621, 0.0
    %v660 = vmax.f32 %v626, 0.0
    %v661 = vmax.f32 %v631, 0.0
    %v662 = vmax.f32 %v636, 0.0
    %v663 = vmax.f32 %v641, 0.0
    %v664 = vmax.f32 %v646, 0.0
    %665 = vadd.xlane.f32.xlu0 %v649
    %v666 = vpop.xlane.xlu0 %665
    %667 = vadd.xlane.f32.xlu0 %v650
    %v668 = vpop.xlane.xlu0 %667
    %669 = vadd.xlane.f32.xlu0 %v651
    %v670 = vpop.xlane.xlu0 %669
    %671 = vadd.xlane.f32.xlu0 %v652
    %v672 = vpop.xlane.xlu0 %671
    %673 = vadd.xlane.f32.xlu0 %v653
    %v674 = vpop.xlane.xlu0 %673
    %675 = vadd.xlane.f32.xlu0 %v654
    %v676 = vpop.xlane.xlu0 %675
    %677 = vadd.xlane.f32.xlu0 %v655
    %v678 = vpop.xlane.xlu0 %677
    %679 = vadd.xlane.f32.xlu0 %v656
    %v680 = vpop.xlane.xlu0 %679
    %681 = vadd.xlane.f32.xlu0 %v657
    %v682 = vpop.xlane.xlu0 %681
    %683 = vadd.xlane.f32.xlu0 %v658
    %v684 = vpop.xlane.xlu0 %683
    %685 = vadd.xlane.f32.xlu0 %v659
    %v686 = vpop.xlane.xlu0 %685
    %687 = vadd.xlane.f32.xlu0 %v660
    %v688 = vpop.xlane.xlu0 %687
    %689 = vadd.xlane.f32.xlu0 %v661
    %v690 = vpop.xlane.xlu0 %689
    %691 = vadd.xlane.f32.xlu0 %v662
    %v692 = vpop.xlane.xlu0 %691
    %693 = vadd.xlane.f32.xlu0 %v663
    %v694 = vpop.xlane.xlu0 %693
    %695 = vadd.xlane.f32.xlu0 %v664
    %v696 = vpop.xlane.xlu0 %695
    %v697 = vmul.f32 %v666, %v299
    %v698 = vmul.f32 %v668, %v299
    %v699 = vmul.f32 %v670, %v299
    %v700 = vmul.f32 %v672, %v299
    %v701 = vmul.f32 %v674, %v299
    %v702 = vmul.f32 %v676, %v299
    %v703 = vmul.f32 %v678, %v299
    %v704 = vmul.f32 %v680, %v299
    %v705 = vmul.f32 %v682, %v299
    %v706 = vmul.f32 %v684, %v299
    %v707 = vmul.f32 %v686, %v299
    %v708 = vmul.f32 %v688, %v299
    %v709 = vmul.f32 %v690, %v299
    %v710 = vmul.f32 %v692, %v299
    %v711 = vmul.f32 %v694, %v299
    %v712 = vmul.f32 %v696, %v299
    %v713 = vsub.f32 %v649, %v697
    %v714 = vsub.f32 %v650, %v698
    %v715 = vsub.f32 %v651, %v699
    %v716 = vsub.f32 %v652, %v700
    %v717 = vsub.f32 %v653, %v701
    %v718 = vsub.f32 %v654, %v702
    %v719 = vsub.f32 %v655, %v703
    %v720 = vsub.f32 %v656, %v704
    %v721 = vsub.f32 %v657, %v705
    %v722 = vsub.f32 %v658, %v706
    %v723 = vsub.f32 %v659, %v707
    %v724 = vsub.f32 %v660, %v708
    %v725 = vsub.f32 %v661, %v709
    %v726 = vsub.f32 %v662, %v710
    %v727 = vsub.f32 %v663, %v711
    %v728 = vsub.f32 %v664, %v712
    %v729 = vmul.f32 %v713, %v713
    %v730 = vmul.f32 %v714, %v714
    %v731 = vmul.f32 %v715, %v715
    %v732 = vmul.f32 %v716, %v716
    %v733 = vmul.f32 %v717, %v717
    %v734 = vmul.f32 %v718, %v718
    %v735 = vmul.f32 %v719, %v719
    %v736 = vmul.f32 %v720, %v720
    %v737 = vmul.f32 %v721, %v721
    %v738 = vmul.f32 %v722, %v722
    %v739 = vmul.f32 %v723, %v723
    %v740 = vmul.f32 %v724, %v724
    %v741 = vmul.f32 %v725, %v725
    %v742 = vmul.f32 %v726, %v726
    %v743 = vmul.f32 %v727, %v727
    %v744 = vmul.f32 %v728, %v728
    %745 = vadd.xlane.f32.xlu0 %v729
    %v746 = vpop.xlane.xlu0 %745
    %747 = vadd.xlane.f32.xlu0 %v730
    %v748 = vpop.xlane.xlu0 %747
    %749 = vadd.xlane.f32.xlu0 %v731
    %v750 = vpop.xlane.xlu0 %749
    %751 = vadd.xlane.f32.xlu0 %v732
    %v752 = vpop.xlane.xlu0 %751
    %753 = vadd.xlane.f32.xlu0 %v733
    %v754 = vpop.xlane.xlu0 %753
    %755 = vadd.xlane.f32.xlu0 %v734
    %v756 = vpop.xlane.xlu0 %755
    %757 = vadd.xlane.f32.xlu0 %v735
    %v758 = vpop.xlane.xlu0 %757
    %759 = vadd.xlane.f32.xlu0 %v736
    %v760 = vpop.xlane.xlu0 %759
    %761 = vadd.xlane.f32.xlu0 %v737
    %v762 = vpop.xlane.xlu0 %761
    %763 = vadd.xlane.f32.xlu0 %v738
    %v764 = vpop.xlane.xlu0 %763
    %765 = vadd.xlane.f32.xlu0 %v739
    %v766 = vpop.xlane.xlu0 %765
    %767 = vadd.xlane.f32.xlu0 %v740
    %v768 = vpop.xlane.xlu0 %767
    %769 = vadd.xlane.f32.xlu0 %v741
    %v770 = vpop.xlane.xlu0 %769
    %771 = vadd.xlane.f32.xlu0 %v742
    %v772 = vpop.xlane.xlu0 %771
    %773 = vadd.xlane.f32.xlu0 %v743
    %v774 = vpop.xlane.xlu0 %773
    %775 = vadd.xlane.f32.xlu0 %v744
    %v776 = vpop.xlane.xlu0 %775
    %v777 = vmul.f32 %v746, %v299
    %v778 = vmul.f32 %v748, %v299
    %v779 = vmul.f32 %v750, %v299
    %v780 = vmul.f32 %v752, %v299
    %v781 = vmul.f32 %v754, %v299
    %v782 = vmul.f32 %v756, %v299
    %v783 = vmul.f32 %v758, %v299
    %v784 = vmul.f32 %v760, %v299
    %v785 = vmul.f32 %v762, %v299
    %v786 = vmul.f32 %v764, %v299
    %v787 = vmul.f32 %v766, %v299
    %v788 = vmul.f32 %v768, %v299
    %v789 = vmul.f32 %v770, %v299
    %v790 = vmul.f32 %v772, %v299
    %v791 = vmul.f32 %v774, %v299
    %v792 = vmul.f32 %v776, %v299
    %v793 = vadd.f32 %v777, 1e-05
    %v794 = vadd.f32 %v778, 1e-05
    %v795 = vadd.f32 %v779, 1e-05
    %v796 = vadd.f32 %v780, 1e-05
    %v797 = vadd.f32 %v781, 1e-05
    %v798 = vadd.f32 %v782, 1e-05
    %v799 = vadd.f32 %v783, 1e-05
    %v800 = vadd.f32 %v784, 1e-05
    %v801 = vadd.f32 %v785, 1e-05
    %v802 = vadd.f32 %v786, 1e-05
    %v803 = vadd.f32 %v787, 1e-05
    %v804 = vadd.f32 %v788, 1e-05
    %v805 = vadd.f32 %v789, 1e-05
    %v806 = vadd.f32 %v790, 1e-05
    %v807 = vadd.f32 %v791, 1e-05
    %v808 = vadd.f32 %v792, 1e-05
    %v809 = vrsqrt.pop %v793
    %v810 = vrsqrt.pop %v794
    %v811 = vrsqrt.pop %v795
    %v812 = vrsqrt.pop %v796
    %v813 = vrsqrt.pop %v797
    %v814 = vrsqrt.pop %v798
    %v815 = vrsqrt.pop %v799
    %v816 = vrsqrt.pop %v800
    %v817 = vrsqrt.pop %v801
    %v818 = vrsqrt.pop %v802
    %v819 = vrsqrt.pop %v803
    %v820 = vrsqrt.pop %v804
    %v821 = vrsqrt.pop %v805
    %v822 = vrsqrt.pop %v806
    %v823 = vrsqrt.pop %v807
    %v824 = vrsqrt.pop %v808
    %v825 = vmul.f32 %v713, %v809
    %v826 = vmul.f32 %v714, %v810
    %v827 = vmul.f32 %v715, %v811
    %v828 = vmul.f32 %v716, %v812
    %v829 = vmul.f32 %v717, %v813
    %v830 = vmul.f32 %v718, %v814
    %v831 = vmul.f32 %v719, %v815
    %v832 = vmul.f32 %v720, %v816
    %v833 = vmul.f32 %v721, %v817
    %v834 = vmul.f32 %v722, %v818
    %v835 = vmul.f32 %v723, %v819
    %v836 = vmul.f32 %v724, %v820
    %v837 = vmul.f32 %v725, %v821
    %v838 = vmul.f32 %v726, %v822
    %v839 = vmul.f32 %v727, %v823
    %v840 = vmul.f32 %v728, %v824
    %v841 = vlaneseq
    %v842 = vshrl.u32 %v841, 7
    %v843 = vsub.s32 0, %v842
    %v844 = vrot.slane %v45, %v843
    %v845 = vmul.f32 %v825, %v844
    %v846 = vmul.f32 %v826, %v844
    %v847 = vmul.f32 %v827, %v844
    %v848 = vmul.f32 %v828, %v844
    %v849 = vmul.f32 %v829, %v844
    %v850 = vmul.f32 %v830, %v844
    %v851 = vmul.f32 %v831, %v844
    %v852 = vmul.f32 %v832, %v844
    %v853 = vmul.f32 %v833, %v844
    %v854 = vmul.f32 %v834, %v844
    %v855 = vmul.f32 %v835, %v844
    %v856 = vmul.f32 %v836, %v844
    %v857 = vmul.f32 %v837, %v844
    %v858 = vmul.f32 %v838, %v844
    %v859 = vmul.f32 %v839, %v844
    %v860 = vmul.f32 %v840, %v844
    %v861 = vlaneseq
    %v862 = vshrl.u32 %v861, 7
    %v863 = vsub.s32 0, %v862
    %v864 = vrot.slane %v46, %v863
    %v865 = vadd.f32 %v845, %v864
    %v866 = vadd.f32 %v846, %v864
    %v867 = vadd.f32 %v847, %v864
    %v868 = vadd.f32 %v848, %v864
    %v869 = vadd.f32 %v849, %v864
    %v870 = vadd.f32 %v850, %v864
    %v871 = vadd.f32 %v851, %v864
    %v872 = vadd.f32 %v852, %v864
    %v873 = vadd.f32 %v853, %v864
    %v874 = vadd.f32 %v854, %v864
    %v875 = vadd.f32 %v855, %v864
    %v876 = vadd.f32 %v856, %v864
    %v877 = vadd.f32 %v857, %v864
    %v878 = vadd.f32 %v858, %v864
    %v879 = vadd.f32 %v859, %v864
    %v880 = vadd.f32 %v860, %v864
    %v881 = vld [vmem:[%s4] sm:$0x1]
    %v883 = vlaneseq
    %v884 = vshrl.u32 %v883, 7
    %v885 = vsub.s32 0, %v884
    %v886 = vrot.slane %v881, %v885
    %v888 = vmul.f32 %v865, %v886
    %v889 = vmul.f32 %v866, %v886
    %v890 = vmul.f32 %v867, %v886
    %v891 = vmul.f32 %v868, %v886
    %v892 = vmul.f32 %v869, %v886
    %v893 = vmul.f32 %v870, %v886
    %v894 = vmul.f32 %v871, %v886
    %v895 = vmul.f32 %v872, %v886
    %v896 = vmul.f32 %v873, %v886
    %v897 = vmul.f32 %v874, %v886
    %v898 = vmul.f32 %v875, %v886
    %v899 = vmul.f32 %v876, %v886
    %v900 = vmul.f32 %v877, %v886
    %v901 = vmul.f32 %v878, %v886
    %v902 = vmul.f32 %v879, %v886
    %v903 = vmul.f32 %v880, %v886
    %904 = vadd.xlane.f32.xlu0 %v888
    %v905 = vpop.xlane.xlu0 %904
    %906 = vadd.xlane.f32.xlu0 %v889
    %v907 = vpop.xlane.xlu0 %906
    %908 = vadd.xlane.f32.xlu0 %v890
    %v909 = vpop.xlane.xlu0 %908
    %910 = vadd.xlane.f32.xlu0 %v891
    %v911 = vpop.xlane.xlu0 %910
    %912 = vadd.xlane.f32.xlu0 %v892
    %v913 = vpop.xlane.xlu0 %912
    %914 = vadd.xlane.f32.xlu0 %v893
    %v915 = vpop.xlane.xlu0 %914
    %916 = vadd.xlane.f32.xlu0 %v894
    %v917 = vpop.xlane.xlu0 %916
    %918 = vadd.xlane.f32.xlu0 %v895
    %v919 = vpop.xlane.xlu0 %918
    %920 = vadd.xlane.f32.xlu0 %v896
    %v921 = vpop.xlane.xlu0 %920
    %922 = vadd.xlane.f32.xlu0 %v897
    %v923 = vpop.xlane.xlu0 %922
    %924 = vadd.xlane.f32.xlu0 %v898
    %v925 = vpop.xlane.xlu0 %924
    %926 = vadd.xlane.f32.xlu0 %v899
    %v927 = vpop.xlane.xlu0 %926
    %928 = vadd.xlane.f32.xlu0 %v900
    %v929 = vpop.xlane.xlu0 %928
    %930 = vadd.xlane.f32.xlu0 %v901
    %v931 = vpop.xlane.xlu0 %930
    %932 = vadd.xlane.f32.xlu0 %v902
    %v933 = vpop.xlane.xlu0 %932
    %934 = vadd.xlane.f32.xlu0 %v903
    %v935 = vpop.xlane.xlu0 %934
    %s936 = sld [smem:[#allocation2]]
    %v937 = vstv %s936
    %v938 = vadd.f32 %v905, %v937
    %v939 = vadd.f32 %v907, %v937
    %v940 = vadd.f32 %v909, %v937
    %v941 = vadd.f32 %v911, %v937
    %v942 = vadd.f32 %v913, %v937
    %v943 = vadd.f32 %v915, %v937
    %v944 = vadd.f32 %v917, %v937
    %v945 = vadd.f32 %v919, %v937
    %v946 = vadd.f32 %v921, %v937
    %v947 = vadd.f32 %v923, %v937
    %v948 = vadd.f32 %v925, %v937
    %v949 = vadd.f32 %v927, %v937
    %v950 = vadd.f32 %v929, %v937
    %v951 = vadd.f32 %v931, %v937
    %v952 = vadd.f32 %v933, %v937
    %v953 = vadd.f32 %v935, %v937
    %v970 = vlaneseq
    %v971 = vand.u32 %v970, 127
    %v972 = vlaneseq
    %v973 = vshrl.u32 %v972, 7
    %v974 = vsub.s32 %v971, %v973
    %v975 = vrot.slane %v938, %v974
    %v976 = vadd.s32 %v971, 4294967288
    %v977 = vlaneseq
    %v978 = vshrl.u32 %v977, 7
    %v979 = vsub.s32 %v976, %v978
    %v980 = vrot.slane %v939, %v979
    %vm981 = vcmask 130112
    %v982 = vsel %vm981, %v980, %v975
    %v983 = vadd.s32 %v971, 4294967280
    %v984 = vlaneseq
    %v985 = vshrl.u32 %v984, 7
    %v986 = vsub.s32 %v983, %v985
    %v987 = vrot.slane %v940, %v986
    %vm988 = vcmask 195712
    %v989 = vsel %vm988, %v987, %v982
    %v990 = vadd.s32 %v971, 4294967272
    %v991 = vlaneseq
    %v992 = vshrl.u32 %v991, 7
    %v993 = vsub.s32 %v990, %v992
    %v994 = vrot.slane %v941, %v993
    %vm995 = vcmask 261312
    %v996 = vsel %vm995, %v994, %v989
    %v997 = vadd.s32 %v971, 4294967264
    %v998 = vlaneseq
    %v999 = vshrl.u32 %v998, 7
    %v1000 = vsub.s32 %v997, %v999
    %v1001 = vrot.slane %v942, %v1000
    %vm1002 = vcmask 326912
    %v1003 = vsel %vm1002, %v1001, %v996
    %v1004 = vadd.s32 %v971, 4294967256
    %v1005 = vlaneseq
    %v1006 = vshrl.u32 %v1005, 7
    %v1007 = vsub.s32 %v1004, %v1006
    %v1008 = vrot.slane %v943, %v1007
    %vm1009 = vcmask 392512
    %v1010 = vsel %vm1009, %v1008, %v1003
    %v1011 = vadd.s32 %v971, 4294967248
    %v1012 = vlaneseq
    %v1013 = vshrl.u32 %v1012, 7
    %v1014 = vsub.s32 %v1011, %v1013
    %v1015 = vrot.slane %v944, %v1014
    %vm1016 = vcmask 458112
    %v1017 = vsel %vm1016, %v1015, %v1010
    %v1018 = vadd.s32 %v971, 4294967240
    %v1019 = vlaneseq
    %v1020 = vshrl.u32 %v1019, 7
    %v1021 = vsub.s32 %v1018, %v1020
    %v1022 = vrot.slane %v945, %v1021
    %vm1023 = vcmask 523712
    %v1024 = vsel %vm1023, %v1022, %v1017
    %v1025 = vadd.s32 %v971, 4294967232
    %v1026 = vlaneseq
    %v1027 = vshrl.u32 %v1026, 7
    %v1028 = vsub.s32 %v1025, %v1027
    %v1029 = vrot.slane %v946, %v1028
    %vm1030 = vcmask 589312
    %v1031 = vsel %vm1030, %v1029, %v1024
    %v1032 = vadd.s32 %v971, 4294967224
    %v1033 = vlaneseq
    %v1034 = vshrl.u32 %v1033, 7
    %v1035 = vsub.s32 %v1032, %v1034
    %v1036 = vrot.slane %v947, %v1035
    %vm1037 = vcmask 654912
    %v1038 = vsel %vm1037, %v1036, %v1031
    %v1039 = vadd.s32 %v971, 4294967216
    %v1040 = vlaneseq
    %v1041 = vshrl.u32 %v1040, 7
    %v1042 = vsub.s32 %v1039, %v1041
    %v1043 = vrot.slane %v948, %v1042
    %vm1044 = vcmask 720512
    %v1045 = vsel %vm1044, %v1043, %v1038
    %v1046 = vadd.s32 %v971, 4294967208
    %v1047 = vlaneseq
    %v1048 = vshrl.u32 %v1047, 7
    %v1049 = vsub.s32 %v1046, %v1048
    %v1050 = vrot.slane %v949, %v1049
    %vm1051 = vcmask 786112
    %v1052 = vsel %vm1051, %v1050, %v1045
    %v1053 = vadd.s32 %v971, 4294967200
    %v1054 = vlaneseq
    %v1055 = vshrl.u32 %v1054, 7
    %v1056 = vsub.s32 %v1053, %v1055
    %v1057 = vrot.slane %v950, %v1056
    %vm1058 = vcmask 851712
    %v1059 = vsel %vm1058, %v1057, %v1052
    %v1060 = vadd.s32 %v971, 4294967192
    %v1061 = vlaneseq
    %v1062 = vshrl.u32 %v1061, 7
    %v1063 = vsub.s32 %v1060, %v1062
    %v1064 = vrot.slane %v951, %v1063
    %vm1065 = vcmask 917312
    %v1066 = vsel %vm1065, %v1064, %v1059
    %v1067 = vadd.s32 %v971, 4294967184
    %v1068 = vlaneseq
    %v1069 = vshrl.u32 %v1068, 7
    %v1070 = vsub.s32 %v1067, %v1069
    %v1071 = vrot.slane %v952, %v1070
    %vm1072 = vcmask 982912
    %v1073 = vsel %vm1072, %v1071, %v1066
    %v1074 = vadd.s32 %v971, 4294967176
    %v1075 = vlaneseq
    %v1076 = vshrl.u32 %v1075, 7
    %v1077 = vsub.s32 %v1074, %v1076
    %v1078 = vrot.slane %v953, %v1077
    %vm1079 = vcmask 1048512
    %v1080 = vsel %vm1079, %v1078, %v1073
    %1082 = vst [vmem:[#allocation3] sm:$0x1] %v1080
    // Predicated region
    $region26: #{tpu_custom_call.1} parent=1 // pred_check
      _
    $region27: #{tpu_custom_call.1} parent=1 // pred_check_branch
      %1084 = sbr.rel (0) target = $region29
    $region28: #{tpu_custom_call.1} parent=1 // pred_region
      %s1086 = ssub.s32 16, 16
      %1087 = vsyncadd [#allocation4], %s1086
      %s1089 = sshll.u32 [#allocation3], 4
      %s1090 = int_to_ptr.vmem [resolvable:$true] %s1089
      %1092 = dma.vmem_to_hbm [thread:$0]  %s1090, 16, %s6, [#allocation4]
    $region29: #{tpu_custom_call.1} parent=1 // pred_fallthru
      _
    // Predicated region
    $region30: #{tpu_custom_call.1} parent=1 // pred_check
      _
    $region31: #{tpu_custom_call.1} parent=1 // pred_check_branch
      %1094 = sbr.rel (0) target = $region33
    $region32: #{tpu_custom_call.1} parent=1 // pred_region
      %1095 = dma.done [#allocation4], 16
    $region33: #{tpu_custom_call.1} parent=1 // pred_fallthru
      _
    %1096 = vsyncpa [#allocation4], 1

</llo_original>
